<compile_context>
chip_gen: v5e
topology: v5e:2x2
jax: 0.10.0
libtpu: 0.0.40
codegen_flags: <defaults>
</compile_context>

<pallas_src>
import jax
import jax.numpy as jnp
import numpy as np
from jax.experimental import pallas as pl
from jax.experimental.pallas import tpu as pltpu


def _drop_path_kernel(scale_ref, x_ref, o_ref):
    # scale_ref: (TB, 1) float32 per-sample scale (0 or 1/keep_prob)
    # x_ref, o_ref: (TB, TF) tiles of the flattened [B, F] input/output.
    # Multiply in the input dtype (bf16 stays bf16; f32 stays f32).
    o_ref[...] = x_ref[...] * scale_ref[...].astype(o_ref.dtype)


def drop_path_pallas(x, key, drop_prob: float = 0.0, training: bool = False,
                     scale_by_keep: bool = True, *,
                     min_pallas_elements: int = 0):
    """Pallas equivalent of timm-style drop_path (per-sample stochastic depth)."""
    if drop_prob == 0.0 or not training:
        return x
    keep_prob = 1.0 - drop_prob

    # Accept either an integer seed or a jax PRNG key.
    if isinstance(key, (int, np.integer)):
        key = jax.random.PRNGKey(int(key))

    orig_shape = x.shape
    B = orig_shape[0]
    F = int(np.prod(orig_shape[1:])) if x.ndim > 1 else 1

    # Per-sample Bernoulli(keep_prob) drawn in the wrapper (same semantics as
    # torch's x.new_empty(shape).bernoulli_(keep_prob)).
    keep = jax.random.bernoulli(key, p=keep_prob, shape=(B,))
    scale = keep.astype(jnp.float32)
    if keep_prob > 0.0 and scale_by_keep:
        scale = scale / jnp.float32(keep_prob)
    scale2 = scale.reshape(B, 1)

    x2 = x.reshape(B, F)

    # Tiny-input fast path: a fused XLA broadcast-multiply beats a kernel
    # launch.  Disabled by default (threshold 0) so the kernel always runs.
    if B * F <= min_pallas_elements:
        return (x2 * scale2.astype(x2.dtype)).reshape(orig_shape)

    itemsize = x2.dtype.itemsize
    target_bytes = 2 * 1024 * 1024  # ~2 MiB per x tile (x4 for dbl-buf in+out)

    # Feature (lane) tile: whole F if it fits the budget, else a multiple of
    # 128 lanes (ragged last block is masked by Pallas).
    if F * itemsize <= target_bytes:
        TF = F
    else:
        TF = max(128, (target_bytes // itemsize) // 128 * 128)

    # Batch (sublane) tile: as many samples as fit in the budget; either the
    # full batch or a multiple of 8 so the block obeys the (8, 128) rule.
    rows = max(1, target_bytes // max(TF * itemsize, 1))
    if rows >= B:
        TB = B
    else:
        TB = min(B, max(8, (rows // 8) * 8))

    grid = (pl.cdiv(B, TB), pl.cdiv(F, TF))

    out = pl.pallas_call(
        _drop_path_kernel,
        out_shape=jax.ShapeDtypeStruct((B, F), x2.dtype),
        grid=grid,
        in_specs=[
            pl.BlockSpec((TB, 1), lambda i, j: (i, 0)),    # per-sample scale
            pl.BlockSpec((TB, TF), lambda i, j: (i, j)),   # x tile
        ],
        out_specs=pl.BlockSpec((TB, TF), lambda i, j: (i, j)),
        compiler_params=pltpu.CompilerParams(
            dimension_semantics=("parallel", "parallel")),
    )(scale2, x2)
    return out.reshape(orig_shape)


class DropPath:
    """Drop paths (Stochastic Depth) per sample -- Pallas TPU version."""

    def __init__(self, drop_prob: float = 0.0, scale_by_keep: bool = True):
        self.drop_prob = drop_prob
        self.scale_by_keep = scale_by_keep
        self.training = True

    def __call__(self, x, key=0):
        return drop_path_pallas(x, key, self.drop_prob, self.training,
                                self.scale_by_keep)


if __name__ == "__main__":
    key = jax.random.PRNGKey(0)
    B, N, D = 2, 8, 32
    x = jax.random.normal(key, (B, N, D), dtype=jnp.float32)

    drop_prob = 0.5
    keep_prob = 1.0 - drop_prob
    module = DropPath(drop_prob=drop_prob, scale_by_keep=True)
    module.training = True

    sample_key = jax.random.PRNGKey(1234)
    y = jax.block_until_ready(module(x, key=sample_key))

    x_np = np.asarray(x)
    y_np = np.asarray(y)

    # Semantic check: every sample is either fully zeroed or scaled by
    # 1/keep_prob (exact stochastic-depth semantics, per-sample decision).
    for b in range(B):
        dropped = np.allclose(y_np[b], 0.0)
        kept = np.allclose(y_np[b], x_np[b] / keep_prob, rtol=1e-5, atol=1e-5)
        assert dropped or kept, f"sample {b} is neither dropped nor kept/scaled"

    # Exact check against the same wrapper-side Bernoulli draw.
    keep_ref = jax.random.bernoulli(sample_key, p=keep_prob, shape=(B,))
    scale_ref = np.asarray(keep_ref).astype(np.float32) / keep_prob
    y_ref = x_np * scale_ref.reshape(B, 1, 1)
    assert np.allclose(y_np, y_ref, rtol=1e-6, atol=1e-6)

    # Eval mode / drop_prob=0 passthrough (plain JAX fast path).
    module.training = False
    y_eval = jax.block_until_ready(module(x, key=sample_key))
    assert np.allclose(np.asarray(y_eval), x_np)

    # scale_by_keep=False path (no 1/keep_prob scaling).
    module_nsk = DropPath(drop_prob=drop_prob, scale_by_keep=False)
    module_nsk.training = True
    y_nsk = jax.block_until_ready(module_nsk(x, key=sample_key))
    y_nsk_ref = x_np * np.asarray(keep_ref).astype(np.float32).reshape(B, 1, 1)
    assert np.allclose(np.asarray(y_nsk), y_nsk_ref, rtol=1e-6, atol=1e-6)

    print("KERNEL_OK")
</pallas_src>

<mosaic_0001>
module attributes {stable_mosaic.version = 11 : i64} {
  func.func @_drop_path_kernel(%arg0: i32, %arg1: i32, %arg2: memref<2x1xf32, #tpu.memory_space<vmem>>, %arg3: memref<2x256xf32, #tpu.memory_space<vmem>>, %arg4: memref<2x256xf32, #tpu.memory_space<vmem>>) attributes {dimension_semantics = [#tpu.dimension_semantics<parallel>, #tpu.dimension_semantics<parallel>], iteration_bounds = array<i64: 1, 1>, scalar_prefetch = 0 : i64, scratch_operands = 0 : i64, tpu.core_type = #tpu.core_type<tc>, window_params = [{transform_indices = @transform_0, window_bounds = array<i64: 2, 1>}, {transform_indices = @transform_1, window_bounds = array<i64: 2, 256>}, {transform_indices = @transform_2, window_bounds = array<i64: 2, 256>}]} {
    %c0 = arith.constant 0 : index
    %c0_0 = arith.constant 0 : index
    %0 = vector.load %arg3[%c0, %c0_0] : memref<2x256xf32, #tpu.memory_space<vmem>>, vector<2x256xf32>
    %c0_1 = arith.constant 0 : index
    %c0_2 = arith.constant 0 : index
    %1 = vector.load %arg2[%c0_1, %c0_2] : memref<2x1xf32, #tpu.memory_space<vmem>>, vector<2x1xf32>
    %2 = vector.broadcast %1 : vector<2x1xf32> to vector<2x256xf32>
    %3 = arith.mulf %0, %2 : vector<2x256xf32>
    %c0_3 = arith.constant 0 : index
    %c0_4 = arith.constant 0 : index
    %4 = vector.load %arg4[%c0_3, %c0_4] : memref<2x256xf32, #tpu.memory_space<vmem>>, vector<2x256xf32>
    tpu.vector_store %arg4[%c0_3, %c0_4], %3 {strides = array<i32>} : memref<2x256xf32, #tpu.memory_space<vmem>>, vector<2x256xf32>,
    return
  }
  func.func @transform_0(%arg0: i32, %arg1: i32) -> (i32, i32) {
    %c0_i32 = arith.constant 0 : i32
    %c0_i32_0 = arith.constant 0 : i32
    return %arg0, %c0_i32 : i32, i32
  }
  func.func @transform_1(%arg0: i32, %arg1: i32) -> (i32, i32) {
    %c0_i32 = arith.constant 0 : i32
    return %arg0, %arg1 : i32, i32
  }
  func.func @transform_2(%arg0: i32, %arg1: i32) -> (i32, i32) {
    %c0_i32 = arith.constant 0 : i32
    return %arg0, %arg1 : i32, i32
  }
}

</mosaic_0001>

<llo_original>
// kernel: tpu_custom_call.1
$region0: #{tpu_custom_call.1}
  #allocation0 [shape = 'u32[]', space=smem, size = 0x4, offset = 0x4, fixed_abs, tag = 'smem constant byte address 0x4 - core index']
  #allocation1 [shape = 'u32[72,128]{1,0:T(1,128)}', space=vmem, size = 0x9000, scoped, tag = 'internal scratch']
  %s0 = inlined_call_operand.vmem [shape: f32[2,1], index: 0, kind: input, shape index: {}]
  %s1 = inlined_call_operand.hbm [shape: f32[2,256], index: 1, kind: input, shape index: {}]
  %s2 = inlined_call_operand.hbm [shape: f32[2,256], index: 2, kind: output, shape index: {}]
  %s3 = sld [smem:[#allocation0]]
  $region22: #{tpu_custom_call.1} parent=0
    _
  %s5 = ssub.s32 1, %s3
  %s6 = scalar_select 0, %s5, %s3
  $region1: #{tpu_custom_call.1} parent=0
    #allocation2 [shape = 'u8[2048]{0}', space=vmem, size = 0x800, scoped, tag = 'input window, operand 1, single buffered']
    #allocation3 [shape = 's32[1]{0}', space=sflag, size = 0x4, scoped, tag = 'scoped memory for tpu_custom_call.1']
    #allocation4 [shape = 's32[1]{0}', space=sflag, size = 0x4, scoped, tag = 'scoped memory for tpu_custom_call.1']
    #allocation5 [shape = 'u8[2048]{0}', space=vmem, size = 0x800, scoped, tag = 'output window, operand 0, single buffered']
    %7 = vsyncpa [#allocation3], 0
    %8 = vsyncpa [#allocation4], 0
    // Predicated region
    $region2: #{tpu_custom_call.1} parent=1 // pred_check
      _
    $region3: #{tpu_custom_call.1} parent=1 // pred_check_branch
      %10 = sbr.rel (0) target = $region5
    $region4: #{tpu_custom_call.1} parent=1 // pred_region
      _
    $region5: #{tpu_custom_call.1} parent=1 // pred_fallthru
      _
    // Predicated region
    $region6: #{tpu_custom_call.1} parent=1 // pred_check
      _
    $region7: #{tpu_custom_call.1} parent=1 // pred_check_branch
      %12 = sbr.rel (0) target = $region9
    $region8: #{tpu_custom_call.1} parent=1 // pred_region
      %14 = vsyncadd [#allocation3], 0
      %s16 = sshll.u32 %s1, 4
      %s17 = int_to_ptr.hbm [resolvable:$true] %s16
      %s18 = sshll.u32 [#allocation2], 4
      %s19 = int_to_ptr.vmem [resolvable:$true] %s18
      %21 = dma.hbm_to_vmem [thread:$0]  %s17, 64, %s19, [#allocation3]
    $region9: #{tpu_custom_call.1} parent=1 // pred_fallthru
      _
    // Predicated region
    $region10: #{tpu_custom_call.1} parent=1 // pred_check
      _
    $region11: #{tpu_custom_call.1} parent=1 // pred_check_branch
      %23 = sbr.rel (0) target = $region13
    $region12: #{tpu_custom_call.1} parent=1 // pred_region
      %25 = dma.done [#allocation3], 64
    $region13: #{tpu_custom_call.1} parent=1 // pred_fallthru
      _
    %v26 = vld [vmem:[#allocation2] sm:$0xf]
    %v27 = vld [vmem:[%s0] sm:$0x3]
    %29 = vset.pattern.permute.xlu0 0
    %30 = vperm.xlu0 %29, %v27
    %v31 = vpop.permute.xlu0 %30
    %v33 = vunpack.c.l.s4 269488144
    %v34 = vunpack.c.0.s8 %v33
    %v35 = vperm.slane %v31, %v34
    %v37 = vmul.f32 %v26, %v35
    %38 = vst [vmem:[#allocation5] sm:$0xf] %v37
    // Predicated region
    $region14: #{tpu_custom_call.1} parent=1 // pred_check
      _
    $region15: #{tpu_custom_call.1} parent=1 // pred_check_branch
      %40 = sbr.rel (0) target = $region17
    $region16: #{tpu_custom_call.1} parent=1 // pred_region
      %42 = vsyncadd [#allocation4], 0
      %s44 = sshll.u32 [#allocation5], 4
      %s45 = int_to_ptr.vmem [resolvable:$true] %s44
      %s46 = sshll.u32 %s2, 4
      %s47 = int_to_ptr.hbm [resolvable:$true] %s46
      %49 = dma.vmem_to_hbm [thread:$0]  %s45, 64, %s47, [#allocation4]
    $region17: #{tpu_custom_call.1} parent=1 // pred_fallthru
      _
    // Predicated region
    $region18: #{tpu_custom_call.1} parent=1 // pred_check
      _
    $region19: #{tpu_custom_call.1} parent=1 // pred_check_branch
      %51 = sbr.rel (0) target = $region21
    $region20: #{tpu_custom_call.1} parent=1 // pred_region
      %53 = dma.done [#allocation4], 64
    $region21: #{tpu_custom_call.1} parent=1 // pred_fallthru
      _
    %54 = vsyncpa [#allocation3], 1
    %55 = vsyncpa [#allocation4], 1

</llo_original>
